<compile_context>
chip_gen: v6e
topology: v6e:2x2x1
jax: 0.10.0
libtpu: 0.0.40
codegen_flags: <defaults>
</compile_context>

<pallas_src>
import functools

import jax
import jax.numpy as jnp
from jax.experimental import pallas as pl
from jax.experimental.pallas import tpu as pltpu


def _engine_conv3x3_silu_kernel(x_ref, w_ref, b_ref, o_ref, patch_ref,
                                *, W, Hs, Cin_pad):
    """One (batch, row-strip) tile per grid step.

    x_ref     : (Cin_pad, (Hs+2)*W + 2) bf16  halo'd, flattened input strip
    w_ref     : (Cout, 9*Cin_pad)       bf16  folded conv weights, (kh,kw,cin)
    b_ref     : (Cout, 1)               f32   bias column
    o_ref     : (Cout, Hs*W)            f32   NCHW-flat output strip (lane-dense)
    patch_ref : (9*Cin_pad, Hs*W)       bf16  im2col scratch
    """
    HWs = Hs * W

    # Horizontal-padding masks only (vertical halo rows are materialized in
    # the strip).  Built + broadcast once, reused for the 3 taps of each dw.
    col = jax.lax.broadcasted_iota(jnp.int32, (Cin_pad, HWs), 1) % W
    keep = {-1: col > 0, 0: None, 1: col < (W - 1)}

    # im2col: each tap is a static lane-offset window of the flat strip.
    # Buffer index of tap (dh, dw) for output position p is
    #   p + (1 + dh)*W + dw + 1      (the leading zero lane keeps offsets >= 0).
    t = 0
    for dh in (-1, 0, 1):
        for dw in (-1, 0, 1):
            off = (1 + dh) * W + dw + 1
            tap = x_ref[:, pl.ds(off, HWs)]              # (Cin_pad, HWs) bf16
            if keep[dw] is not None:
                tap = jnp.where(keep[dw], tap, 0)        # zero the W-wrap cols
            patch_ref[pl.ds(t * Cin_pad, Cin_pad), :] = tap
            t += 1

    # Single K = 9*Cin_pad matmul on the MXU: bf16 operands, f32 accumulation.
    acc = jnp.dot(w_ref[...], patch_ref[...],
                  preferred_element_type=jnp.float32)    # (Cout, HWs) f32
    acc = acc + b_ref[...]                               # lane broadcast
    y = acc * jax.nn.sigmoid(acc)                        # SiLU; exp on the EUP
    o_ref[...] = y.astype(o_ref.dtype)


def _pick_strip_rows(H, W, cin_pad, cout, vmem_budget_bytes=8 * 1024 * 1024):
    """Largest strip height whose live VMEM fits the budget while keeping
    Hs*W a multiple of 128 (unmasked lane-dense output stores).  If the whole
    image fits, still prefer >= 2 strips per image so the BlockSpec pipeline
    has steps over which to overlap DMA with compute."""
    def live_bytes(hs):
        return (2 * cin_pad * ((hs + 2) * W + 2) * 2     # 2x-buffered bf16 input
                + 9 * cin_pad * hs * W * 2               # bf16 im2col scratch
                + 2 * cout * hs * W * 4)                 # 2x-buffered f32 output

    best = H
    for hs in range(H, 0, -1):
        if H % hs:
            continue
        if hs != H and (hs * W) % 128:
            continue
        if live_bytes(hs) <= vmem_budget_bytes:
            best = hs
            break
    if best == H:                     # give the pipeline >= 2 steps per image
        for hs in range(H // 2, 0, -1):
            if H % hs == 0 and (hs * W) % 128 == 0:
                best = hs
                break
    return best


def conv3x3_silu_nchw(x_nchw, w_mat, b_col, *, strip_rows):
    """x: (B, Cin, H, W) f32; w_mat: (Cout, 9*Cin_pad) bf16; b_col: (Cout, 1) f32."""
    B, Cin, H, W = x_nchw.shape
    Cout = w_mat.shape[0]
    Cin_pad = w_mat.shape[1] // 9
    Hs = strip_rows
    assert H % Hs == 0
    S = H // Hs
    HWs = Hs * W
    Lpad = (Hs + 2) * W + 2

    # bf16 activations once (halves input DMA); pad channels to a sublane
    # multiple so im2col scratch writes stay sublane-aligned.
    x = x_nchw.astype(jnp.bfloat16)
    if Cin_pad != Cin:
        x = jnp.pad(x, ((0, 0), (0, Cin_pad - Cin), (0, 0), (0, 0)))

    # Vertical halo: one zero row each side, then overlapping (Hs+2)-row
    # strips, flattened, plus one zero lane at each end so every tap in the
    # kernel is a static, in-bounds lane slice.
    # NOTE: at production resolutions the halo'd strips would be gathered by
    # manual DMA from the original NCHW tensor (memory_space=pl.ANY) instead
    # of materializing this (slightly duplicated) strips array in HBM.
    xh = jnp.pad(x, ((0, 0), (0, 0), (1, 1), (0, 0)))            # (B,Cp,H+2,W)
    strips = jnp.stack([xh[:, :, s * Hs: s * Hs + Hs + 2, :]
                        for s in range(S)], axis=1)              # (B,S,Cp,Hs+2,W)
    strips = strips.reshape(B, S, Cin_pad, (Hs + 2) * W)
    strips = jnp.pad(strips, ((0, 0), (0, 0), (0, 0), (1, 1)))   # (B,S,Cp,Lpad)

    kernel = functools.partial(_engine_conv3x3_silu_kernel,
                               W=W, Hs=Hs, Cin_pad=Cin_pad)

    out_flat = pl.pallas_call(
        kernel,
        out_shape=jax.ShapeDtypeStruct((B, Cout, H * W), jnp.float32),
        grid=(B, S),
        in_specs=[
            # one halo'd strip per step
            pl.BlockSpec((None, None, Cin_pad, Lpad), lambda b, s: (b, s, 0, 0)),
            # grid-constant weights/bias: constant index map => fetched once by
            # the pipeline.  At realistic Cout sizes single-buffer these
            # (pl.Buffered(1)) or park them in persistent VMEM scratch to
            # reclaim the spare pipeline buffer (matters under v7x's 64 MiB).
            pl.BlockSpec((Cout, 9 * Cin_pad), lambda b, s: (0, 0)),
            pl.BlockSpec((Cout, 1), lambda b, s: (0, 0)),
        ],
        out_specs=pl.BlockSpec((None, Cout, HWs), lambda b, s: (b, 0, s)),
        scratch_shapes=[pltpu.VMEM((9 * Cin_pad, HWs), jnp.bfloat16)],
        compiler_params=pltpu.CompilerParams(
            dimension_semantics=("parallel", "parallel"),
            vmem_limit_bytes=32 * 1024 * 1024),
    )(strips, w_mat, b_col)

    # Free layout plumbing: (B, Cout, H*W) -> (B, Cout, H, W); already NCHW.
    return out_flat.reshape(B, Cout, H, W)


class TRTModuleJAX:
    """JAX stand-in for TRTModule: 1 input binding, 1 pre-shaped output binding."""

    def __init__(self, in_shape, cout, key):
        B, Cin, H, W = in_shape
        k_w, k_b = jax.random.split(key)
        # deterministic "engine weights" (HWIO master copy, f32)
        self.w_hwio = (jax.random.normal(k_w, (3, 3, Cin, cout), jnp.float32)
                       * (1.0 / (3.0 * 3.0 * Cin) ** 0.5))
        self.bias = jax.random.normal(k_b, (cout,), jnp.float32) * 0.1

        # Pre-fold weights once for the kernel: (Cout, 3, 3, Cin_pad) ->
        # (Cout, 9*Cin_pad) bf16; column order (kh, kw, cin) matches the
        # kernel's im2col row order.
        self.cin_pad = ((Cin + 7) // 8) * 8
        w_t = jnp.transpose(self.w_hwio, (3, 0, 1, 2))          # (Cout,3,3,Cin)
        if self.cin_pad != Cin:
            w_t = jnp.pad(w_t, ((0, 0), (0, 0), (0, 0), (0, self.cin_pad - Cin)))
        self.w_mat = w_t.reshape(cout, 9 * self.cin_pad).astype(jnp.bfloat16)
        self.b_col = self.bias.reshape(cout, 1)

        # Strip height fixed at "engine build" time (TRT bindings are static).
        self.strip_rows = _pick_strip_rows(H, W, self.cin_pad, cout)

        self.num_inputs = 1
        self.num_outputs = 1
        self.out_info = [((B, cout, H, W), jnp.float32)]
        self._fwd = jax.jit(functools.partial(conv3x3_silu_nchw,
                                              strip_rows=self.strip_rows))

    def forward(self, *inputs):
        assert len(inputs) == self.num_inputs, \
            "Number of inputs does not match model's requirements"
        x = inputs[0]
        outputs = [self._fwd(x, self.w_mat, self.b_col)]
        return tuple(outputs) if len(outputs) > 1 else outputs[0]

    __call__ = forward


if __name__ == "__main__":
    key = jax.random.PRNGKey(0)
    k_x, k_m = jax.random.split(key)

    B, Cin, H, W = 2, 4, 16, 16
    Cout = 8
    x = jax.random.normal(k_x, (B, Cin, H, W), jnp.float32)

    module = TRTModuleJAX((B, Cin, H, W), Cout, k_m)
    out = module(x)
    out = jax.block_until_ready(out)

    # Pure-JAX reference with the same bf16 MXU operands / f32 accumulation.
    ref = jax.lax.conv_general_dilated(
        x.astype(jnp.bfloat16), module.w_hwio.astype(jnp.bfloat16),
        window_strides=(1, 1), padding="SAME",
        dimension_numbers=("NCHW", "HWIO", "NCHW"),
        preferred_element_type=jnp.float32)
    ref = ref + module.bias.reshape(1, Cout, 1, 1)
    ref = ref * jax.nn.sigmoid(ref)

    assert out.shape == (B, Cout, H, W), out.shape
    max_err = float(jnp.max(jnp.abs(out - ref)))
    assert max_err < 1e-2, max_err

    print("KERNEL_OK")
</pallas_src>

<mosaic_0001>
module attributes {stable_mosaic.version = 11 : i64} {
  func.func @_engine_conv3x3_silu_kernel(%arg0: i32, %arg1: i32, %arg2: memref<1x1x8x162xbf16, #tpu.memory_space<vmem>>, %arg3: memref<8x72xbf16, #tpu.memory_space<vmem>>, %arg4: memref<8x1xf32, #tpu.memory_space<vmem>>, %arg5: memref<1x8x128xf32, #tpu.memory_space<vmem>>, %arg6: memref<72x128xbf16, #tpu.memory_space<vmem>>) attributes {dimension_semantics = [#tpu.dimension_semantics<parallel>, #tpu.dimension_semantics<parallel>], iteration_bounds = array<i64: 2, 2>, scalar_prefetch = 0 : i64, scratch_operands = 1 : i64, tpu.core_type = #tpu.core_type<tc>, window_params = [{transform_indices = @transform_0, window_bounds = array<i64: 1, 1, 8, 162>}, {pipeline_mode = #tpu.pipeline_mode<synchronous>, transform_indices = @transform_1, window_bounds = array<i64: 8, 72>}, {pipeline_mode = #tpu.pipeline_mode<synchronous>, transform_indices = @transform_2, window_bounds = array<i64: 8, 1>}, {transform_indices = @transform_3, window_bounds = array<i64: 1, 8, 128>}]} {
    %0 = tpu.iota {dimensions = array<i32: 1>} : vector<8x128xi32>
    %c16_i32 = arith.constant 16 : i32
    %c0_i32 = arith.constant 0 : i32
    %1 = arith.cmpi eq, %c16_i32, %c0_i32 : i32
    %c1_i32 = arith.constant 1 : i32
    %2 = arith.select %1, %c1_i32, %c16_i32 : i32
    %3 = vector.broadcast %2 : i32 to vector<8x128xi32>
    %4 = arith.remsi %0, %3 : vector<8x128xi32>
    %c0_i32_0 = arith.constant 0 : i32
    %5 = vector.broadcast %c0_i32_0 : i32 to vector<8x128xi32>
    %6 = arith.cmpi ne, %4, %5 : vector<8x128xi32>
    %c0_i32_1 = arith.constant 0 : i32
    %7 = vector.broadcast %c0_i32_1 : i32 to vector<8x128xi32>
    %8 = arith.cmpi slt, %4, %7 : vector<8x128xi32>
    %c0_i32_2 = arith.constant 0 : i32
    %9 = arith.cmpi slt, %2, %c0_i32_2 : i32
    %10 = vector.broadcast %9 : i1 to vector<8x128xi1>
    %11 = vector.broadcast %10 : vector<8x128xi1> to vector<8x128xi1>
    %12 = arith.xori %8, %11 : vector<8x128xi1>
    %13 = arith.andi %12, %6 : vector<8x128xi1>
    %14 = vector.broadcast %2 : i32 to vector<8x128xi32>
    %15 = arith.addi %4, %14 : vector<8x128xi32>
    %16 = arith.select %13, %15, %4 : vector<8x128xi1>, vector<8x128xi32>
    %c0_i32_3 = arith.constant 0 : i32
    %17 = vector.broadcast %c0_i32_3 : i32 to vector<8x128xi32>
    %18 = arith.cmpi sgt, %16, %17 : vector<8x128xi32>
    %c15_i32 = arith.constant 15 : i32
    %19 = vector.broadcast %c15_i32 : i32 to vector<8x128xi32>
    %20 = arith.cmpi slt, %16, %19 : vector<8x128xi32>
    %c0 = arith.constant 0 : index
    %c0_4 = arith.constant 0 : index
    %c0_5 = arith.constant 0 : index
    %c0_6 = arith.constant 0 : index
    %21 = vector.load %arg2[%c0, %c0_4, %c0_5, %c0_6] : memref<1x1x8x162xbf16, #tpu.memory_space<vmem>>, vector<1x1x8x128xbf16>
    %22 = vector.shape_cast %21 : vector<1x1x8x128xbf16> to vector<8x128xbf16>
    %c0_i32_7 = arith.constant 0 : i32
    %23 = arith.sitofp %c0_i32_7 : i32 to bf16
    %24 = vector.broadcast %23 : bf16 to vector<8x128xbf16>
    %25 = arith.select %18, %22, %24 : vector<8x128xi1>, vector<8x128xbf16>
    %c0_8 = arith.constant 0 : index
    %c0_9 = arith.constant 0 : index
    %26 = vector.load %arg6[%c0_8, %c0_9] : memref<72x128xbf16, #tpu.memory_space<vmem>>, vector<8x128xbf16>
    tpu.vector_store %arg6[%c0_8, %c0_9], %25 {strides = array<i32>} : memref<72x128xbf16, #tpu.memory_space<vmem>>, vector<8x128xbf16>,
    %c0_10 = arith.constant 0 : index
    %c0_11 = arith.constant 0 : index
    %c0_12 = arith.constant 0 : index
    %c1 = arith.constant 1 : index
    %27 = vector.load %arg2[%c0_10, %c0_11, %c0_12, %c1] : memref<1x1x8x162xbf16, #tpu.memory_space<vmem>>, vector<1x1x8x128xbf16>
    %28 = vector.shape_cast %27 : vector<1x1x8x128xbf16> to vector<8x128xbf16>
    %c8 = arith.constant 8 : index
    %c0_13 = arith.constant 0 : index
    %29 = vector.load %arg6[%c8, %c0_13] : memref<72x128xbf16, #tpu.memory_space<vmem>>, vector<8x128xbf16>
    tpu.vector_store %arg6[%c8, %c0_13], %28 {strides = array<i32>} : memref<72x128xbf16, #tpu.memory_space<vmem>>, vector<8x128xbf16>,
    %c0_14 = arith.constant 0 : index
    %c0_15 = arith.constant 0 : index
    %c0_16 = arith.constant 0 : index
    %c2 = arith.constant 2 : index
    %30 = vector.load %arg2[%c0_14, %c0_15, %c0_16, %c2] : memref<1x1x8x162xbf16, #tpu.memory_space<vmem>>, vector<1x1x8x128xbf16>
    %31 = vector.shape_cast %30 : vector<1x1x8x128xbf16> to vector<8x128xbf16>
    %c0_i32_17 = arith.constant 0 : i32
    %32 = arith.sitofp %c0_i32_17 : i32 to bf16
    %33 = vector.broadcast %32 : bf16 to vector<8x128xbf16>
    %34 = arith.select %20, %31, %33 : vector<8x128xi1>, vector<8x128xbf16>
    %c16 = arith.constant 16 : index
    %c0_18 = arith.constant 0 : index
    %35 = vector.load %arg6[%c16, %c0_18] : memref<72x128xbf16, #tpu.memory_space<vmem>>, vector<8x128xbf16>
    tpu.vector_store %arg6[%c16, %c0_18], %34 {strides = array<i32>} : memref<72x128xbf16, #tpu.memory_space<vmem>>, vector<8x128xbf16>,
    %c0_19 = arith.constant 0 : index
    %c0_20 = arith.constant 0 : index
    %c0_21 = arith.constant 0 : index
    %c16_22 = arith.constant 16 : index
    %36 = vector.load %arg2[%c0_19, %c0_20, %c0_21, %c16_22] : memref<1x1x8x162xbf16, #tpu.memory_space<vmem>>, vector<1x1x8x128xbf16>
    %37 = vector.shape_cast %36 : vector<1x1x8x128xbf16> to vector<8x128xbf16>
    %c0_i32_23 = arith.constant 0 : i32
    %38 = arith.sitofp %c0_i32_23 : i32 to bf16
    %39 = vector.broadcast %38 : bf16 to vector<8x128xbf16>
    %40 = arith.select %18, %37, %39 : vector<8x128xi1>, vector<8x128xbf16>
    %c24 = arith.constant 24 : index
    %c0_24 = arith.constant 0 : index
    %41 = vector.load %arg6[%c24, %c0_24] : memref<72x128xbf16, #tpu.memory_space<vmem>>, vector<8x128xbf16>
    tpu.vector_store %arg6[%c24, %c0_24], %40 {strides = array<i32>} : memref<72x128xbf16, #tpu.memory_space<vmem>>, vector<8x128xbf16>,
    %c0_25 = arith.constant 0 : index
    %c0_26 = arith.constant 0 : index
    %c0_27 = arith.constant 0 : index
    %c17 = arith.constant 17 : index
    %42 = vector.load %arg2[%c0_25, %c0_26, %c0_27, %c17] : memref<1x1x8x162xbf16, #tpu.memory_space<vmem>>, vector<1x1x8x128xbf16>
    %43 = vector.shape_cast %42 : vector<1x1x8x128xbf16> to vector<8x128xbf16>
    %c32 = arith.constant 32 : index
    %c0_28 = arith.constant 0 : index
    %44 = vector.load %arg6[%c32, %c0_28] : memref<72x128xbf16, #tpu.memory_space<vmem>>, vector<8x128xbf16>
    tpu.vector_store %arg6[%c32, %c0_28], %43 {strides = array<i32>} : memref<72x128xbf16, #tpu.memory_space<vmem>>, vector<8x128xbf16>,
    %c0_29 = arith.constant 0 : index
    %c0_30 = arith.constant 0 : index
    %c0_31 = arith.constant 0 : index
    %c18 = arith.constant 18 : index
    %45 = vector.load %arg2[%c0_29, %c0_30, %c0_31, %c18] : memref<1x1x8x162xbf16, #tpu.memory_space<vmem>>, vector<1x1x8x128xbf16>
    %46 = vector.shape_cast %45 : vector<1x1x8x128xbf16> to vector<8x128xbf16>
    %c0_i32_32 = arith.constant 0 : i32
    %47 = arith.sitofp %c0_i32_32 : i32 to bf16
    %48 = vector.broadcast %47 : bf16 to vector<8x128xbf16>
    %49 = arith.select %20, %46, %48 : vector<8x128xi1>, vector<8x128xbf16>
    %c40 = arith.constant 40 : index
    %c0_33 = arith.constant 0 : index
    %50 = vector.load %arg6[%c40, %c0_33] : memref<72x128xbf16, #tpu.memory_space<vmem>>, vector<8x128xbf16>
    tpu.vector_store %arg6[%c40, %c0_33], %49 {strides = array<i32>} : memref<72x128xbf16, #tpu.memory_space<vmem>>, vector<8x128xbf16>,
    %c0_34 = arith.constant 0 : index
    %c0_35 = arith.constant 0 : index
    %c0_36 = arith.constant 0 : index
    %c32_37 = arith.constant 32 : index
    %51 = vector.load %arg2[%c0_34, %c0_35, %c0_36, %c32_37] : memref<1x1x8x162xbf16, #tpu.memory_space<vmem>>, vector<1x1x8x128xbf16>
    %52 = vector.shape_cast %51 : vector<1x1x8x128xbf16> to vector<8x128xbf16>
    %c0_i32_38 = arith.constant 0 : i32
    %53 = arith.sitofp %c0_i32_38 : i32 to bf16
    %54 = vector.broadcast %53 : bf16 to vector<8x128xbf16>
    %55 = arith.select %18, %52, %54 : vector<8x128xi1>, vector<8x128xbf16>
    %c48 = arith.constant 48 : index
    %c0_39 = arith.constant 0 : index
    %56 = vector.load %arg6[%c48, %c0_39] : memref<72x128xbf16, #tpu.memory_space<vmem>>, vector<8x128xbf16>
    tpu.vector_store %arg6[%c48, %c0_39], %55 {strides = array<i32>} : memref<72x128xbf16, #tpu.memory_space<vmem>>, vector<8x128xbf16>,
    %c0_40 = arith.constant 0 : index
    %c0_41 = arith.constant 0 : index
    %c0_42 = arith.constant 0 : index
    %c33 = arith.constant 33 : index
    %57 = vector.load %arg2[%c0_40, %c0_41, %c0_42, %c33] : memref<1x1x8x162xbf16, #tpu.memory_space<vmem>>, vector<1x1x8x128xbf16>
    %58 = vector.shape_cast %57 : vector<1x1x8x128xbf16> to vector<8x128xbf16>
    %c56 = arith.constant 56 : index
    %c0_43 = arith.constant 0 : index
    %59 = vector.load %arg6[%c56, %c0_43] : memref<72x128xbf16, #tpu.memory_space<vmem>>, vector<8x128xbf16>
    tpu.vector_store %arg6[%c56, %c0_43], %58 {strides = array<i32>} : memref<72x128xbf16, #tpu.memory_space<vmem>>, vector<8x128xbf16>,
    %c0_44 = arith.constant 0 : index
    %c0_45 = arith.constant 0 : index
    %c0_46 = arith.constant 0 : index
    %c34 = arith.constant 34 : index
    %60 = vector.load %arg2[%c0_44, %c0_45, %c0_46, %c34] : memref<1x1x8x162xbf16, #tpu.memory_space<vmem>>, vector<1x1x8x128xbf16>
    %61 = vector.shape_cast %60 : vector<1x1x8x128xbf16> to vector<8x128xbf16>
    %c0_i32_47 = arith.constant 0 : i32
    %62 = arith.sitofp %c0_i32_47 : i32 to bf16
    %63 = vector.broadcast %62 : bf16 to vector<8x128xbf16>
    %64 = arith.select %20, %61, %63 : vector<8x128xi1>, vector<8x128xbf16>
    %c64 = arith.constant 64 : index
    %c0_48 = arith.constant 0 : index
    %65 = vector.load %arg6[%c64, %c0_48] : memref<72x128xbf16, #tpu.memory_space<vmem>>, vector<8x128xbf16>
    tpu.vector_store %arg6[%c64, %c0_48], %64 {strides = array<i32>} : memref<72x128xbf16, #tpu.memory_space<vmem>>, vector<8x128xbf16>,
    %c0_49 = arith.constant 0 : index
    %c0_50 = arith.constant 0 : index
    %66 = vector.load %arg3[%c0_49, %c0_50] : memref<8x72xbf16, #tpu.memory_space<vmem>>, vector<8x72xbf16>
    %c0_51 = arith.constant 0 : index
    %c0_52 = arith.constant 0 : index
    %67 = vector.load %arg6[%c0_51, %c0_52] : memref<72x128xbf16, #tpu.memory_space<vmem>>, vector<72x128xbf16>
    %cst = arith.constant dense<0.000000e+00> : vector<8x128xf32>
    %68 = tpu.matmul %66, %67, %cst {dimension_numbers = #tpu.dot_dimension_numbers<[1], [0], [0], [1], [0, 0, 1, 1], [], []>} : vector<8x72xbf16>, vector<72x128xbf16>, vector<8x128xf32> -> vector<8x128xf32>
    %c0_53 = arith.constant 0 : index
    %c0_54 = arith.constant 0 : index
    %69 = vector.load %arg4[%c0_53, %c0_54] : memref<8x1xf32, #tpu.memory_space<vmem>>, vector<8x1xf32>
    %70 = vector.broadcast %69 : vector<8x1xf32> to vector<8x128xf32>
    %71 = arith.addf %68, %70 : vector<8x128xf32>
    %72 = arith.negf %71 : vector<8x128xf32>
    %73 = math.exp %72 : vector<8x128xf32>
    %cst_55 = arith.constant 1.000000e+00 : f32
    %74 = vector.broadcast %cst_55 : f32 to vector<8x128xf32>
    %75 = arith.addf %74, %73 : vector<8x128xf32>
    %76 = arith.divf %74, %75 : vector<8x128xf32>
    %77 = arith.mulf %71, %76 : vector<8x128xf32>
    %c0_56 = arith.constant 0 : index
    %c0_57 = arith.constant 0 : index
    %c0_58 = arith.constant 0 : index
    %78 = vector.load %arg5[%c0_56, %c0_57, %c0_58] : memref<1x8x128xf32, #tpu.memory_space<vmem>>, vector<1x8x128xf32>
    %79 = vector.shape_cast %78 : vector<1x8x128xf32> to vector<8x128xf32>
    %80 = vector.shape_cast %77 : vector<8x128xf32> to vector<1x8x128xf32>
    tpu.vector_store %arg5[%c0_56, %c0_57, %c0_58], %80 {strides = array<i32>} : memref<1x8x128xf32, #tpu.memory_space<vmem>>, vector<1x8x128xf32>,
    return
  }
  func.func @transform_0(%arg0: i32, %arg1: i32) -> (i32, i32, i32, i32) {
    %c0_i32 = arith.constant 0 : i32
    %c0_i32_0 = arith.constant 0 : i32
    %c0_i32_1 = arith.constant 0 : i32
    return %arg0, %arg1, %c0_i32, %c0_i32_0 : i32, i32, i32, i32
  }
  func.func @transform_1(%arg0: i32, %arg1: i32) -> (i32, i32) {
    %c0_i32 = arith.constant 0 : i32
    %c0_i32_0 = arith.constant 0 : i32
    %c0_i32_1 = arith.constant 0 : i32
    return %c0_i32, %c0_i32_0 : i32, i32
  }
  func.func @transform_2(%arg0: i32, %arg1: i32) -> (i32, i32) {
    %c0_i32 = arith.constant 0 : i32
    %c0_i32_0 = arith.constant 0 : i32
    %c0_i32_1 = arith.constant 0 : i32
    return %c0_i32, %c0_i32_0 : i32, i32
  }
  func.func @transform_3(%arg0: i32, %arg1: i32) -> (i32, i32, i32) {
    %c0_i32 = arith.constant 0 : i32
    %c0_i32_0 = arith.constant 0 : i32
    return %arg0, %c0_i32, %arg1 : i32, i32, i32
  }
}

</mosaic_0001>

<llo_original>
// kernel: conv3x3_silu_nchw.1
$region0: #{conv3x3_silu_nchw.1}
  #allocation0 [shape = 'u32[]', space=smem, size = 0x4, offset = 0x4, fixed_abs, tag = 'smem constant byte address 0x4 - core index']
  #allocation1 [shape = 'u32[144,128]{1,0:T(1,128)}', space=vmem, size = 0x12000, scoped, tag = 'internal scratch']
  #allocation2 [shape = 'bf16[72,128]{1,0:T(8,128)(2,1)}', space=vmem, size = 0x4800, scoped, tag = 'scratch operand']
  %s0 = inlined_call_operand.vmem [shape: bf16[2,2,8,162], index: 0, kind: input, shape index: {}]
  %s1 = inlined_call_operand.vmem [shape: bf16[8,72], index: 1, kind: input, shape index: {}]
  %s2 = inlined_call_operand.vmem [shape: f32[8,1], index: 2, kind: input, shape index: {}]
  %s3 = inlined_call_operand.vmem [shape: f32[2,8,256], index: 3, kind: output, shape index: {}]
  %s4 = sld [smem:[#allocation0]]
  $region45: #{conv3x3_silu_nchw.1} parent=0
    _
  %s6 = ssub.s32 1, %s4
  %s7 = scalar_select 0, %s6, %s4
  loop: start=0, step=1, limit=6
  $region2: #{conv3x3_silu_nchw.1} parent=0 // loop_pre_header
    _
  $region3: #{conv3x3_silu_nchw.1} parent=0 // loop_header
    %s9 = sphi 0, %s13
    %p10 = scmp.ge.s32.totalorder %s9, 6
    %s16 = sphi 0, %s28
    %s17 = sphi 0, %s24
    %s18 = sphi 0, %s16
    %s19 = sphi 0, %s17
    %s20 = sphi 0, %s18
    %s21 = sphi 0, %s19
    %s33 = sphi 0, %s35
    %s36 = sphi 0, %s33
    %s37 = sphi 0, %s36
    %s53 = sphi 0, %s37
    %s57 = sphi 0, %s57
    %s59 = sphi 0, %s57
    %s60 = sphi 0, %s59
    %s74 = sphi 0, %s60
    %s78 = sphi 0, %s78
    %s80 = sphi 0, %s78
    %s81 = sphi 0, %s80
    %s95 = sphi 0, %s81
    %s103 = sphi 0, %s105
    %s106 = sphi 0, %s103
    %s107 = sphi 0, %s106
    %s123 = sphi 0, %s107
  $region4: #{conv3x3_silu_nchw.1} parent=0 // loop_header_branch
    %12 = sbr.rel (%p10) target = $region8
  $region5: #{conv3x3_silu_nchw.1} parent=0 // loop_body
    %s14 = ssub.s32 %s9, 1
    %s15 = ssub.s32 %s9, 2
    %s22 = sadd.s32 1, %s17
    %p23 = scmp.ge.s32.totalorder %s22, 2
    %s24 = scalar_select %p23, 0, %s22
    %s25 = sadd.s32 1, %s16
    %s26 = scalar_select %p23, %s25, %s16
    %p27 = scmp.ge.s32.totalorder %s26, 2
    %s28 = scalar_select %p27, 0, %s26
    %s29 = ssub.s32 %s16, %s28
    %s30 = ssub.s32 %s17, %s24
    %s31 = sor.u32 %s29, %s30
    %p32 = scmp.eq.s32.totalorder %s31, 0
    %s34 = sadd.s32 %s33, 1
    %s35 = scalar_select %p32, %s33, %s34
    %p38 = pneg %p32
    %p39 = scmp.eq.s32.totalorder %s9, 3
    %p40 = por %p38, %p39
    %p41 = scmp.ne.s32.totalorder %s33, %s36
    %p42 = scmp.eq.s32.totalorder %s9, 0
    %p43 = por %p41, %p42
    %p44 = scmp.ne.s32.totalorder %s33, %s36
    %p45 = scmp.eq.s32.totalorder %s14, 3
    %p46 = por %p44, %p45
    %p47 = scmp.ne.s32.totalorder %s36, %s37
    %p48 = scmp.eq.s32.totalorder %s14, 0
    %p49 = por %p47, %p48
    %p50 = scmp.ne.s32.totalorder %s36, %s37
    %p51 = scmp.eq.s32.totalorder %s15, 3
    %p52 = por %p50, %p51
    %p54 = scmp.ne.s32.totalorder %s37, %s53
    %p55 = scmp.eq.s32.totalorder %s15, 0
    %p56 = por %p54, %p55
    %s58 = sadd.s32 %s57, 1
    %p61 = scmp.eq.s32.totalorder %s9, 3
    %p62 = scmp.ne.s32.totalorder %s57, %s59
    %p63 = scmp.eq.s32.totalorder %s9, 0
    %p64 = por %p62, %p63
    %p65 = scmp.ne.s32.totalorder %s57, %s59
    %p66 = scmp.eq.s32.totalorder %s14, 3
    %p67 = por %p65, %p66
    %p68 = scmp.ne.s32.totalorder %s59, %s60
    %p69 = scmp.eq.s32.totalorder %s14, 0
    %p70 = por %p68, %p69
    %p71 = scmp.ne.s32.totalorder %s59, %s60
    %p72 = scmp.eq.s32.totalorder %s15, 3
    %p73 = por %p71, %p72
    %p75 = scmp.ne.s32.totalorder %s60, %s74
    %p76 = scmp.eq.s32.totalorder %s15, 0
    %p77 = por %p75, %p76
    %s79 = sadd.s32 %s78, 1
    %p82 = scmp.eq.s32.totalorder %s9, 3
    %p83 = scmp.ne.s32.totalorder %s78, %s80
    %p84 = scmp.eq.s32.totalorder %s9, 0
    %p85 = por %p83, %p84
    %p86 = scmp.ne.s32.totalorder %s78, %s80
    %p87 = scmp.eq.s32.totalorder %s14, 3
    %p88 = por %p86, %p87
    %p89 = scmp.ne.s32.totalorder %s80, %s81
    %p90 = scmp.eq.s32.totalorder %s14, 0
    %p91 = por %p89, %p90
    %p92 = scmp.ne.s32.totalorder %s80, %s81
    %p93 = scmp.eq.s32.totalorder %s15, 3
    %p94 = por %p92, %p93
    %p96 = scmp.ne.s32.totalorder %s81, %s95
    %p97 = scmp.eq.s32.totalorder %s15, 0
    %p98 = por %p96, %p97
    %s99 = ssub.s32 %s16, %s28
    %s100 = ssub.s32 %s17, %s24
    %s101 = sor.u32 %s99, %s100
    %p102 = scmp.eq.s32.totalorder %s101, 0
    %s104 = sadd.s32 %s103, 1
    %s105 = scalar_select %p102, %s103, %s104
    %p108 = pneg %p102
    %p109 = scmp.eq.s32.totalorder %s9, 3
    %p110 = por %p108, %p109
    %p111 = scmp.ne.s32.totalorder %s103, %s106
    %p112 = scmp.eq.s32.totalorder %s9, 0
    %p113 = por %p111, %p112
    %p114 = scmp.ne.s32.totalorder %s103, %s106
    %p115 = scmp.eq.s32.totalorder %s14, 3
    %p116 = por %p114, %p115
    %p117 = scmp.ne.s32.totalorder %s106, %s107
    %p118 = scmp.eq.s32.totalorder %s14, 0
    %p119 = por %p117, %p118
    %p120 = scmp.ne.s32.totalorder %s106, %s107
    %p121 = scmp.eq.s32.totalorder %s15, 3
    %p122 = por %p120, %p121
    %p124 = scmp.ne.s32.totalorder %s107, %s123
    %p125 = scmp.eq.s32.totalorder %s15, 0
    %p126 = por %p124, %p125
    %p127 = scmp.le.s32.totalorder 1, %s9
    %p128 = scmp.lt.s32.totalorder %s9, 5
    %p129 = pnand %p127, %p128
    %p130 = pneg %p129
    // Predicated region
    $region9: #{conv3x3_silu_nchw.1} parent=5 // pred_check
      _
    $region10: #{conv3x3_silu_nchw.1} parent=5 // pred_check_branch
      %132 = sbr.rel (%p129) target = $region12
    $region11: #{conv3x3_silu_nchw.1} parent=5 // pred_region
      %s133 = ssub.s32 %s9, 1
      // Predicated region
      $region13: #{conv3x3_silu_nchw.1} parent=11 // pred_check
        %p134 = pneg %p70
      $region14: #{conv3x3_silu_nchw.1} parent=11 // pred_check_branch
        %136 = sbr.rel (%p134) target = $region16
      $region15: #{conv3x3_silu_nchw.1} parent=11 // pred_region
        _
      $region16: #{conv3x3_silu_nchw.1} parent=11 // pred_fallthru
        _
      // Predicated region
      $region17: #{conv3x3_silu_nchw.1} parent=11 // pred_check
        %p137 = pneg %p91
      $region18: #{conv3x3_silu_nchw.1} parent=11 // pred_check_branch
        %139 = sbr.rel (%p137) target = $region20
      $region19: #{conv3x3_silu_nchw.1} parent=11 // pred_region
        _
      $region20: #{conv3x3_silu_nchw.1} parent=11 // pred_fallthru
        _
    $region12: #{conv3x3_silu_nchw.1} parent=5 // pred_fallthru
      _
    %p140 = scmp.lt.s32.totalorder %s9, 4
    // Predicated region
    $region21: #{conv3x3_silu_nchw.1} parent=5 // pred_check
      %p141 = pneg %p140
    $region22: #{conv3x3_silu_nchw.1} parent=5 // pred_check_branch
      %143 = sbr.rel (%p141) target = $region24
    $region23: #{conv3x3_silu_nchw.1} parent=5 // pred_region
      // Predicated region
      $region25: #{conv3x3_silu_nchw.1} parent=23 // pred_check
        %p144 = pneg %p43
      $region26: #{conv3x3_silu_nchw.1} parent=23 // pred_check_branch
        %146 = sbr.rel (%p144) target = $region28
      $region27: #{conv3x3_silu_nchw.1} parent=23 // pred_region
        %p147 = scmp.lt.s32.totalorder %s16, 1
        %s148 = scalar_select %p147, %s16, 1
        %p149 = scmp.lt.s32.totalorder %s17, 1
        %s150 = scalar_select %p149, %s17, 1
        %s151 = smul.addr %s150, 2
        %s152 = smul.addr %s148, 4
        %s153 = sadd.s32 %s151, %s152
        %s154 = smul.addr %s153, 4
        %s155 = scalar_lea.vmem %s0, %s154
      $region28: #{conv3x3_silu_nchw.1} parent=23 // pred_fallthru
        _
    $region24: #{conv3x3_silu_nchw.1} parent=5 // pred_fallthru
      _
    %p156 = scmp.le.s32.totalorder 1, %s9
    %p157 = scmp.lt.s32.totalorder %s9, 5
    %p158 = pnand %p156, %p157
    %p159 = pneg %p158
    // Predicated region
    $region29: #{conv3x3_silu_nchw.1} parent=5 // pred_check
      _
    $region30: #{conv3x3_silu_nchw.1} parent=5 // pred_check_branch
      %161 = sbr.rel (%p158) target = $region32
    $region31: #{conv3x3_silu_nchw.1} parent=5 // pred_region
      %s162 = ssub.s32 %s9, 1
      %p163 = scmp.lt.s32.totalorder %s18, 1
      %s164 = scalar_select %p163, %s18, 1
      %p165 = scmp.lt.s32.totalorder %s19, 1
      %s166 = scalar_select %p165, %s19, 1
      %s167 = smul.addr %s166, 2
      %s168 = smul.addr %s164, 4
      %s169 = sadd.s32 %s167, %s168
      %s170 = smul.addr %s169, 4
      %s171 = scalar_lea.vmem %s0, %s170
      %p172 = pneg %p49
      %p173 = pneg %p46
      %p174 = pneg %p70
      %p175 = pneg %p67
      %p176 = pneg %p91
      %p177 = pneg %p88
      %p178 = pneg %p119
      %p179 = pneg %p116
      %p180 = scmp.lt.s32.totalorder %s18, 1
      %s181 = scalar_select %p180, %s18, 1
      %p182 = scmp.lt.s32.totalorder %s19, 1
      %s183 = scalar_select %p182, %s19, 1
      %s184 = smul.addr %s181, 2
      %s185 = sadd.s32 %s183, %s184
      %s186 = smul.addr %s185, 8
      %s187 = scalar_lea.vmem %s3, %s186
      %p188 = scmp.lt.s32.totalorder %s18, 1
      %s189 = scalar_select %p188, %s18, 1
      %p190 = scmp.lt.s32.totalorder %s19, 1
      %s191 = scalar_select %p190, %s19, 1
      %s192 = smul.addr %s191, 2
      %s193 = smul.addr %s189, 4
      %s194 = sadd.s32 %s192, %s193
      %s195 = smul.addr %s194, 4
      %s196 = scalar_lea.vmem %s0, %s195
      %p197 = scmp.lt.s32.totalorder %s18, 1
      %s198 = scalar_select %p197, %s18, 1
      %p199 = scmp.lt.s32.totalorder %s19, 1
      %s200 = scalar_select %p199, %s19, 1
      %s201 = smul.addr %s198, 2
      %s202 = sadd.s32 %s200, %s201
      %s203 = smul.addr %s202, 8
      %s204 = scalar_lea.vmem %s3, %s203
      %v208 = vlaneseq
      %v209 = vand.u32 %v208, 127
      %vm210 = vcmp.lt.s32.totalorder %v209, 0
      %v211 = vsub.s32 0, %v209
      %v212 = vsel %vm210, %v211, %v209
      %v213 = vshrl.u32 %v212, 4
      %v214 = vand.u32 %v212, 15
      %v215 = vsub.s32 0, %v214
      %v216 = vsel %vm210, %v215, %v214
      %vm217 = vcmp.ne.s32.totalorder %v216, 0
      %vm218 = vcmp.lt.s32.totalorder %v216, 0
      %vm219 = vmand %vm218, %vm217
      %v220 = vadd.s32 %v216, 16
      %v221 = vsel %vm219, %v220, %v216
      %vm222 = vcmp.gt.s32.totalorder %v221, 0
      %vm223 = vcmp.lt.s32.totalorder %v221, 15
      %v224 = vld [vmem:[%s196] sm:$0xf]
      %vm225 = vmpackc.low %vm222, %vm222
      %v226 = vsel %vm225, %v224, 0
      %227 = vst [vmem:[#allocation2] sm:$0xf] %v226
      %v228 = vld [vmem:[%s196] sm:$0xff]
      %230 = vrot.lane.b32.xlu0 %v228, 127
      %v231 = vpop.permute.xlu0 %230
      %v232 = vrot.slane %v231, 4
      %vm233 = vcmask 1039360
      %v234 = vsel %vm233, %v231, %v232
      %236 = vst [vmem:[#allocation2 + $0x4] sm:$0xf] %v234
      %v237 = vld [vmem:[%s196] sm:$0xff]
      %vm238 = vmpackc.low %vm223, %vm223
      %v239 = vsel %vm238, 65537, 0
      %240 = vrot.lane.b32.xlu0 %v239, 2
      %v241 = vpop.permute.xlu0 %240
      %v242 = vrot.slane %v241, 4
      %vm243 = vcmask 15360
      %v244 = vsel %vm243, %v242, %v241
      %vm245 = vcmp.ne.s16.totalorder %v244, 0
      %v246 = vsel %vm245, %v237, 0
      %248 = vrot.lane.b32.xlu0 %v246, 126
      %v249 = vpop.permute.xlu0 %248
      %v250 = vrot.slane %v249, 4
      %vm251 = vcmask 1031168
      %v252 = vsel %vm251, %v249, %v250
      %254 = vst [vmem:[#allocation2 + $0x8] sm:$0xf] %v252
      %v255 = vld [vmem:[%s196] sm:$0xff]
      %v256 = vsel %vm225, 65537, 0
      %257 = vrot.lane.b32.xlu0 %v256, 16
      %v258 = vpop.permute.xlu0 %257
      %v259 = vrot.slane %v258, 4
      %vm260 = vcmask 130048
      %v261 = vsel %vm260, %v259, %v258
      %vm262 = vcmp.ne.s16.totalorder %v261, 0
      %v263 = vsel %vm262, %v255, 0
      %265 = vrot.lane.b32.xlu0 %v263, 112
      %v266 = vpop.permute.xlu0 %265
      %v267 = vrot.slane %v266, 4
      %vm268 = vcmask 916480
      %v269 = vsel %vm268, %v266, %v267
      %271 = vst [vmem:[#allocation2 + $0xc] sm:$0xf] %v269
      %v272 = vld [vmem:[%s196] sm:$0xff]
      %274 = vrot.lane.b32.xlu0 %v272, 111
      %v275 = vpop.permute.xlu0 %274
      %v276 = vrot.slane %v275, 4
      %vm277 = vcmask 908288
      %v278 = vsel %vm277, %v275, %v276
      %280 = vst [vmem:[#allocation2 + $0x10] sm:$0xf] %v278
      %v281 = vld [vmem:[%s196] sm:$0xff]
      %282 = vrot.lane.b32.xlu0 %v239, 18
      %v283 = vpop.permute.xlu0 %282
      %v284 = vrot.slane %v283, 4
      %vm285 = vcmask 146432
      %v286 = vsel %vm285, %v284, %v283
      %vm287 = vcmp.ne.s16.totalorder %v286, 0
      %v288 = vsel %vm287, %v281, 0
      %290 = vrot.lane.b32.xlu0 %v288, 110
      %v291 = vpop.permute.xlu0 %290
      %v292 = vrot.slane %v291, 4
      %vm293 = vcmask 900096
      %v294 = vsel %vm293, %v291, %v292
      %296 = vst [vmem:[#allocation2 + $0x14] sm:$0xf] %v294
      %v297 = vld [vmem:[%s196] sm:$0xff]
      %298 = vrot.lane.b32.xlu0 %v256, 32
      %v299 = vpop.permute.xlu0 %298
      %v300 = vrot.slane %v299, 4
      %vm301 = vcmask 261120
      %v302 = vsel %vm301, %v300, %v299
      %vm303 = vcmp.ne.s16.totalorder %v302, 0
      %v304 = vsel %vm303, %v297, 0
      %306 = vrot.lane.b32.xlu0 %v304, 96
      %v307 = vpop.permute.xlu0 %306
      %v308 = vrot.slane %v307, 4
      %vm309 = vcmask 785408
      %v310 = vsel %vm309, %v307, %v308
      %312 = vst [vmem:[#allocation2 + $0x18] sm:$0xf] %v310
      %v313 = vld [vmem:[%s196] sm:$0xff]
      %315 = vrot.lane.b32.xlu0 %v313, 95
      %v316 = vpop.permute.xlu0 %315
      %v317 = vrot.slane %v316, 4
      %vm318 = vcmask 777216
      %v319 = vsel %vm318, %v316, %v317
      %321 = vst [vmem:[#allocation2 + $0x1c] sm:$0xf] %v319
      %v322 = vld [vmem:[%s196] sm:$0xff]
      %323 = vrot.lane.b32.xlu0 %v239, 34
      %v324 = vpop.permute.xlu0 %323
      %v325 = vrot.slane %v324, 4
      %vm326 = vcmask 277504
      %v327 = vsel %vm326, %v325, %v324
      %vm328 = vcmp.ne.s16.totalorder %v327, 0
      %v329 = vsel %vm328, %v322, 0
      %331 = vrot.lane.b32.xlu0 %v329, 94
      %v332 = vpop.permute.xlu0 %331
      %v333 = vrot.slane %v332, 4
      %vm334 = vcmask 769024
      %v335 = vsel %vm334, %v332, %v333
      %337 = vst [vmem:[#allocation2 + $0x20] sm:$0xf] %v335
      %v338 = vld [vmem:[%s1] sm:$0xf]
      %v339 = vld [vmem:[#allocation2] sm:$0xf]
      %v340 = vld [vmem:[#allocation2 + $0x4] sm:$0xf]
      %v341 = vld [vmem:[#allocation2 + $0x8] sm:$0xf]
      %v342 = vld [vmem:[#allocation2 + $0xc] sm:$0xf]
      %v343 = vld [vmem:[#allocation2 + $0x10] sm:$0xf]
      %v344 = vld [vmem:[#allocation2 + $0x14] sm:$0xf]
      %v345 = vld [vmem:[#allocation2 + $0x18] sm:$0xf]
      %v346 = vld [vmem:[#allocation2 + $0x1c] sm:$0xf]
      %v347 = vld [vmem:[#allocation2 + $0x20] sm:$0xf]
      %v348 = vld [vmem:[%s2] sm:$0xff]
      %350 = vset.pattern.permute.xlu0 0
      %351 = vperm.xlu0 %350, %v348
      %v352 = vpop.permute.xlu0 %351
      %v363 = vunpack.c.l.b16 %v339
      %v364 = vunpack.c.l.b16 %v340
      %v365 = vunpack.c.l.b16 %v341
      %v366 = vunpack.c.l.b16 %v342
      %v367 = vunpack.c.l.b16 %v343
      %v368 = vunpack.c.l.b16 %v344
      %v369 = vunpack.c.l.b16 %v345
      %v370 = vunpack.c.l.b16 %v346
      %v371 = vunpack.c.l.b16 %v347
      %v372 = vpack.c.b16 %v364, %v363
      %v373 = vpack.c.b16 %v366, %v365
      %v374 = vpack.c.b16 %v368, %v367
      %v375 = vpack.c.b16 %v370, %v369
      %v376 = vpack.c.b16 %v371, %v371
      %vm381 = vcmask 588800
      %v383 = vsel %vm381, %v338, 0
      %vm385 = vcmask 1043456
      %v387 = vsel %vm385, %v376, 0
      %389 = vmatprep.subr.bf16.mxu0 0
      %390 = vmatpush1.bf16.msra.mxu0 0
      %391 = vmatprep.subr.bf16.mxu0 0
      %392 = vmatpush1.bf16.msra.mxu0 0
      %393 = vmatprep.subr.bf16.mxu0 0
      %394 = vmatpush1.bf16.msra.mxu0 0
      %395 = vmatprep.subr.bf16.mxu0 0
      %396 = vmatpush1.bf16.msra.mxu0 %v387
      %397 = vmatprep.subr.bf16.mxu0 0
      %398 = vmatpush1.bf16.msra.mxu0 %v375
      %399 = vmatprep.subr.bf16.mxu0 0
      %400 = vmatpush1.bf16.msra.mxu0 %v374
      %401 = vmatprep.subr.bf16.mxu0 0
      %402 = vmatpush1.bf16.msra.mxu0 %v373
      %403 = vmatprep.subr.bf16.mxu0 0
      %404 = vmatpush1.bf16.msra.mxu0 %v372
      %405 = vmatprep.subr.bf16.mxu0 0
      %406 = vmatpush2.bf16.msra.mxu0 0
      %407 = vmatprep.subr.bf16.mxu0 0
      %408 = vmatpush2.bf16.msra.mxu0 0
      %409 = vmatprep.subr.bf16.mxu0 0
      %410 = vmatpush2.bf16.msra.mxu0 0
      %411 = vmatprep.subr.bf16.mxu0 0
      %412 = vmatpush2.bf16.msra.mxu0 0
      %413 = vmatprep.subr.bf16.mxu0 0
      %414 = vmatpush2.bf16.msra.mxu0 0
      %415 = vmatprep.subr.bf16.mxu0 0
      %416 = vmatpush2.bf16.msra.mxu0 0
      %417 = vmatprep.subr.bf16.mxu0 0
      %418 = vmatpush2.bf16.msra.mxu0 0
      %419 = vmatprep.subr.bf16.mxu0 0
      %420 = vmatpush2.bf16.msra.mxu0 0
      %421 = vmatprep.mubr.bf16.mxu0 0
      %422 = vmatmul.mubr.bf16.gmra.mxu0 %v383
      %v423 = vpop.f32.mrf.mxu0
      %v424 = vadd.f32 %v352, %v423
      %v425 = vpop.f32.mrf.mxu0
      %v426 = vpop.f32.mrf.mxu0
      %v427 = vpop.f32.mrf.mxu0
      %428 = vdwg.mxu0
      %v429 = vxor.u32 %v424, 2147483648
      %v430 = vmul.f32 %v429, 1.442695
      %v431 = vpow.pop %v430
      %v432 = vadd.f32 %v431, 1.0
      %v433 = vrcp.pop %v432
      %v434 = vmul.f32 1.0, %v433
      %v435 = vmul.f32 %v424, %v434
      %436 = vst [vmem:[%s204] sm:$0xff] %v435
      %p437 = scmp.lt.s32.totalorder %s18, 1
      %s438 = scalar_select %p437, %s18, 1
      %p439 = scmp.lt.s32.totalorder %s19, 1
      %s440 = scalar_select %p439, %s19, 1
      %s441 = smul.addr %s438, 2
      %s442 = sadd.s32 %s440, %s441
      %s443 = smul.addr %s442, 8
      %s444 = scalar_lea.vmem %s3, %s443
      // Predicated region
      $region33: #{conv3x3_silu_nchw.1} parent=31 // pred_check
        %p445 = pneg %p116
      $region34: #{conv3x3_silu_nchw.1} parent=31 // pred_check_branch
        %447 = sbr.rel (%p445) target = $region36
      $region35: #{conv3x3_silu_nchw.1} parent=31 // pred_region
        _
      $region36: #{conv3x3_silu_nchw.1} parent=31 // pred_fallthru
        _
    $region32: #{conv3x3_silu_nchw.1} parent=5 // pred_fallthru
      _
    %p448 = scmp.le.s32.totalorder 2, %s9
    // Predicated region
    $region37: #{conv3x3_silu_nchw.1} parent=5 // pred_check
      %p449 = pneg %p448
    $region38: #{conv3x3_silu_nchw.1} parent=5 // pred_check_branch
      %451 = sbr.rel (%p449) target = $region40
    $region39: #{conv3x3_silu_nchw.1} parent=5 // pred_region
      %s452 = ssub.s32 %s9, 2
      // Predicated region
      $region41: #{conv3x3_silu_nchw.1} parent=39 // pred_check
        %p453 = pneg %p122
      $region42: #{conv3x3_silu_nchw.1} parent=39 // pred_check_branch
        %455 = sbr.rel (%p453) target = $region44
      $region43: #{conv3x3_silu_nchw.1} parent=39 // pred_region
        %p456 = scmp.lt.s32.totalorder %s20, 1
        %s457 = scalar_select %p456, %s20, 1
        %p458 = scmp.lt.s32.totalorder %s21, 1
        %s459 = scalar_select %p458, %s21, 1
        %s460 = smul.addr %s457, 2
        %s461 = sadd.s32 %s459, %s460
        %s462 = smul.addr %s461, 8
        %s463 = scalar_lea.vmem %s3, %s462
      $region44: #{conv3x3_silu_nchw.1} parent=39 // pred_fallthru
        _
    $region40: #{conv3x3_silu_nchw.1} parent=5 // pred_fallthru
      _
  $region6: #{conv3x3_silu_nchw.1} parent=0 // loop_footer
    %s13 = sadd.s32 1, %s9
  $region7: #{conv3x3_silu_nchw.1} parent=0 // loop_footer_branch
    %8 = sbr.rel target = $region3
  $region8: #{conv3x3_silu_nchw.1} parent=0 // loop_exit
    _

</llo_original>
